<compile_context>
chip_gen: v7x
topology: tpu7x:2x2x1
jax: 0.10.0
libtpu: 0.0.40
codegen_flags: <defaults>
</compile_context>

<pallas_src>
import functools

import jax
import jax.numpy as jnp
from jax.experimental import pallas as pl
from jax.experimental.pallas import tpu as pltpu

GAMMA = 3.0
IGNORE_INDEX = 255
EPS = 1e-6

LANE = 128            # TPU lane width (last dim)
TILE_ROWS_MAX = 2048  # sublane rows per block: (2048,128) f32 = 1 MiB / stream
NUM_SPLITS = 2        # leading "parallel" axis (2 TensorCores on v7x)


def _focal_kernel(*refs, gamma, ignore_index, eps, n_valid, tile_rows,
                  blocks_per_split, has_weights):
    if has_weights:
        o_ref, t_ref, w_ref, sum_ref, cnt_ref = refs
    else:
        o_ref, t_ref, sum_ref, cnt_ref = refs
        w_ref = None

    p = pl.program_id(0)   # parallel split (TensorCore shard)
    i = pl.program_id(1)   # sequential block index within the split

    # Output blocks are the accumulators: same block index for every i, so they
    # stay VMEM-resident across the "arbitrary" axis and are written back to
    # HBM once per split.
    @pl.when(i == 0)
    def _():
        sum_ref[...] = jnp.zeros_like(sum_ref)
        cnt_ref[...] = jnp.zeros_like(cnt_ref)

    # Flat element index of every lane in this block. Masks (a) the ragged tail
    # pad, (b) rows of an edge-partial block past the array end, (c) whole
    # over-provisioned blocks of an uneven split (their index_map is clamped in
    # the wrapper, so the DMA reads valid data that is fully masked here).
    # NOTE: int32 flat index => supports up to 2**31 elements.
    block_idx = p * blocks_per_split + i
    row = jax.lax.broadcasted_iota(jnp.int32, (tile_rows, LANE), 0)
    lane = jax.lax.broadcasted_iota(jnp.int32, (tile_rows, LANE), 1)
    flat = (block_idx * tile_rows + row) * LANE + lane
    in_range = flat < n_valid

    o = jax.nn.sigmoid(o_ref[...].astype(jnp.float32))
    t_raw = t_ref[...].astype(jnp.float32)
    mask = in_range & (t_raw != ignore_index)

    o = jnp.clip(o, eps, 1.0 - eps)
    t = jnp.clip(t_raw, eps, 1.0 - eps)
    pt = (1.0 - t) * (1.0 - o) + t * o
    one_m_pt = 1.0 - pt

    g = float(gamma)
    if g == 0.0:
        focal = jnp.ones_like(one_m_pt)
    elif g.is_integer() and 1.0 <= g <= 8.0:
        focal = one_m_pt                       # integer gamma: VPU multiplies
        for _unused in range(int(g) - 1):
            focal = focal * one_m_pt
    else:
        focal = one_m_pt ** g                  # non-integer gamma: EUP pow

    loss = -focal * jnp.log(pt)
    if has_weights:
        loss = loss * w_ref[...].astype(jnp.float32)
    loss = jnp.where(mask, loss, 0.0)          # masked-out garbage/NaN -> 0
    cnt = mask.astype(jnp.float32)

    # Sublane-group tree reduce to one vreg-shaped (8,128) partial: the reshape
    # matches the existing vreg layout (no data movement), the sum over axis 0
    # is plain vector adds (VPU), no cross-lane XLU work per step.
    groups = tile_rows // 8
    part_sum = loss.reshape(groups, 8, LANE).sum(axis=0)
    part_cnt = cnt.reshape(groups, 8, LANE).sum(axis=0)

    sum_ref[...] += part_sum[None]
    cnt_ref[...] += part_cnt[None]


def focal_loss_2d(outputs, targets, weights=1.0, *, gamma=GAMMA,
                  ignore_index=IGNORE_INDEX, eps=EPS,
                  tile_rows_max=TILE_ROWS_MAX, num_splits=NUM_SPLITS):
    outputs = jnp.asarray(outputs, jnp.float32)
    targets = jnp.asarray(targets)
    weights = jnp.asarray(weights, jnp.float32)

    n = int(outputs.size)
    has_weights = int(weights.size) != 1     # scalar weight -> no HBM stream

    o_flat = outputs.reshape(-1)

    # Targets transport: keep (u)int8 narrow (1 B/elem), other ints as int32,
    # floats as f32; upcast to f32 inside the kernel for the math. 8-bit data
    # packs 32 rows per vreg, so its sublane granule is 32 instead of 8.
    if targets.dtype in (jnp.uint8, jnp.int8):
        t_flat = targets.reshape(-1)
        sub_mult = 32
    elif jnp.issubdtype(targets.dtype, jnp.integer):
        t_flat = targets.reshape(-1).astype(jnp.int32)
        sub_mult = 8
    else:
        t_flat = targets.reshape(-1).astype(jnp.float32)
        sub_mult = 8

    if has_weights:
        w_flat = jnp.broadcast_to(weights, outputs.shape).reshape(-1).astype(jnp.float32)

    # Pad (only when needed, <= sub_mult*128-1 elements) so the row count is a
    # multiple of the sublane-pack granule; padded elements are masked by the
    # in-kernel flat-index compare.
    pad = (-n) % (sub_mult * LANE)
    if pad:
        o_flat = jnp.pad(o_flat, (0, pad))
        t_flat = jnp.pad(t_flat, (0, pad))
        if has_weights:
            w_flat = jnp.pad(w_flat, (0, pad))

    rows = (n + pad) // LANE                       # multiple of sub_mult (>= 8)
    tile_rows = min(int(tile_rows_max), rows)
    if tile_rows < rows:
        tile_rows = max(sub_mult, (tile_rows // sub_mult) * sub_mult)

    num_blocks = pl.cdiv(rows, tile_rows)
    n_splits = max(1, min(int(num_splits), num_blocks))
    blocks_per_split = pl.cdiv(num_blocks, n_splits)

    o2 = o_flat.reshape(rows, LANE)
    t2 = t_flat.reshape(rows, LANE)
    inputs = [o2, t2]
    if has_weights:
        inputs.append(w_flat.reshape(rows, LANE))

    def in_map(p, i):
        # clamp so over-provisioned tail blocks of an uneven split never index
        # out of range (their contribution is masked away inside the kernel)
        return (jnp.minimum(p * blocks_per_split + i, num_blocks - 1), 0)

    in_spec = pl.BlockSpec((tile_rows, LANE), in_map)
    out_spec = pl.BlockSpec((1, 8, LANE), lambda p, i: (p, 0, 0))

    kernel = functools.partial(
        _focal_kernel, gamma=float(gamma), ignore_index=float(ignore_index),
        eps=float(eps), n_valid=n, tile_rows=int(tile_rows),
        blocks_per_split=int(blocks_per_split), has_weights=has_weights)

    part_sum, part_cnt = pl.pallas_call(
        kernel,
        out_shape=(jax.ShapeDtypeStruct((n_splits, 8, LANE), jnp.float32),
                   jax.ShapeDtypeStruct((n_splits, 8, LANE), jnp.float32)),
        grid_spec=pltpu.PrefetchScalarGridSpec(
            num_scalar_prefetch=0,
            grid=(n_splits, blocks_per_split),
            in_specs=[in_spec] * len(inputs),
            out_specs=[out_spec, out_spec],
        ),
        compiler_params=pltpu.CompilerParams(
            dimension_semantics=("parallel", "arbitrary")),
    )(*inputs)

    total = jnp.sum(part_sum)
    count = jnp.sum(part_cnt)
    if not has_weights:
        total = total * weights.reshape(())   # fold scalar weight in here
    return total / count


def _reference(outputs, targets, weights=1.0, gamma=GAMMA,
               ignore_index=IGNORE_INDEX, eps=EPS):
    o = jax.nn.sigmoid(jnp.ravel(jnp.asarray(outputs, jnp.float32)))
    t = jnp.ravel(jnp.asarray(targets)).astype(jnp.float32)
    w = jnp.ravel(jnp.broadcast_to(jnp.asarray(weights, jnp.float32),
                                   jnp.shape(outputs)))
    mask = t != ignore_index
    o = jnp.clip(o, eps, 1.0 - eps)
    tc = jnp.clip(t, eps, 1.0 - eps)
    pt = (1.0 - tc) * (1.0 - o) + tc * o
    loss = -((1.0 - pt) ** gamma) * jnp.log(pt) * w
    loss = jnp.where(mask, loss, 0.0)
    return jnp.sum(loss) / jnp.sum(mask.astype(jnp.float32))


if __name__ == "__main__":
    key = jax.random.PRNGKey(0)
    k1, k2, k3, k4, k5 = jax.random.split(key, 5)

    # --- Test 1: uint8 targets (narrow HBM transport), scalar weight ---------
    B, C, H, W = 2, 4, 32, 32
    outputs = jax.random.normal(k1, (B, C, H, W), dtype=jnp.float32)      # logits
    tgt = (jax.random.uniform(k2, (B, C, H, W)) > 0.5).astype(jnp.uint8)  # {0,1}
    ign = jax.random.uniform(k3, (B, C, H, W)) < 0.1
    targets_u8 = jnp.where(ign, IGNORE_INDEX, tgt).astype(jnp.uint8)

    loss1 = jax.block_until_ready(focal_loss_2d(outputs, targets_u8))
    ref1 = _reference(outputs, targets_u8)
    assert jnp.allclose(loss1, ref1, rtol=1e-4, atol=1e-5), (loss1, ref1)

    # --- Test 2: float targets, per-pixel weights, ragged size ---------------
    # (exercises the tail pad, multi-block grid, edge-partial block, uneven
    #  2-way split with a clamped tail block, and the streamed-weights path)
    B2, C2, H2, W2 = 2, 4, 50, 130     # 52000 elements, not a multiple of 1024
    out2 = jax.random.normal(k4, (B2, C2, H2, W2), dtype=jnp.float32)
    t2 = (jax.random.uniform(k2, (B2, C2, H2, W2)) > 0.5).astype(jnp.float32)
    ign2 = jax.random.uniform(k3, (B2, C2, H2, W2)) < 0.1
    t2 = jnp.where(ign2, float(IGNORE_INDEX), t2)
    w2 = jax.random.uniform(k5, (B2, C2, H2, W2), minval=0.5, maxval=1.5)

    loss2 = jax.block_until_ready(focal_loss_2d(out2, t2, w2, tile_rows_max=64))
    ref2 = _reference(out2, t2, w2)
    assert jnp.allclose(loss2, ref2, rtol=1e-4, atol=1e-5), (loss2, ref2)

    # --- Test 3: non-integer gamma (pow path) ---------------------------------
    loss3 = jax.block_until_ready(focal_loss_2d(outputs, targets_u8, gamma=2.5))
    ref3 = _reference(outputs, targets_u8, gamma=2.5)
    assert jnp.allclose(loss3, ref3, rtol=1e-4, atol=1e-5), (loss3, ref3)

    print("KERNEL_OK")
</pallas_src>

<mosaic_0001>
module attributes {stable_mosaic.version = 11 : i64} {
  func.func @_focal_kernel(%arg0: i32, %arg1: i32, %arg2: memref<64x128xf32, #tpu.memory_space<vmem>>, %arg3: memref<64x128xi8, #tpu.memory_space<vmem>>, %arg4: memref<1x8x128xf32, #tpu.memory_space<vmem>>, %arg5: memref<1x8x128xf32, #tpu.memory_space<vmem>>) attributes {dimension_semantics = [#tpu.dimension_semantics<parallel>, #tpu.dimension_semantics<arbitrary>], iteration_bounds = array<i64: 1, 1>, scalar_prefetch = 0 : i64, scratch_operands = 0 : i64, tpu.core_type = #tpu.core_type<tc>, window_params = [{transform_indices = @transform_0, window_bounds = array<i64: 64, 128>}, {transform_indices = @transform_1, window_bounds = array<i64: 64, 128>}, {transform_indices = @transform_2, window_bounds = array<i64: 1, 8, 128>}, {transform_indices = @transform_3, window_bounds = array<i64: 1, 8, 128>}]} {
    %c0_i32 = arith.constant 0 : i32
    %0 = arith.cmpi eq, %arg1, %c0_i32 : i32
    %1 = arith.extui %0 : i1 to i32
    %c0_i32_0 = arith.constant 0 : i32
    %2 = arith.cmpi ne, %1, %c0_i32_0 : i32
    scf.if %2 {
      %cst_28 = arith.constant 0.000000e+00 : f32
      %65 = vector.broadcast %cst_28 : f32 to vector<1x8x128xf32>
      %c0_29 = arith.constant 0 : index
      %c0_30 = arith.constant 0 : index
      %c0_31 = arith.constant 0 : index
      %66 = vector.load %arg4[%c0_29, %c0_30, %c0_31] : memref<1x8x128xf32, #tpu.memory_space<vmem>>, vector<1x8x128xf32>
      tpu.vector_store %arg4[%c0_29, %c0_30, %c0_31], %65 {strides = array<i32>} : memref<1x8x128xf32, #tpu.memory_space<vmem>>, vector<1x8x128xf32>,
      %cst_32 = arith.constant 0.000000e+00 : f32
      %67 = vector.broadcast %cst_32 : f32 to vector<1x8x128xf32>
      %c0_33 = arith.constant 0 : index
      %c0_34 = arith.constant 0 : index
      %c0_35 = arith.constant 0 : index
      %68 = vector.load %arg5[%c0_33, %c0_34, %c0_35] : memref<1x8x128xf32, #tpu.memory_space<vmem>>, vector<1x8x128xf32>
      tpu.vector_store %arg5[%c0_33, %c0_34, %c0_35], %67 {strides = array<i32>} : memref<1x8x128xf32, #tpu.memory_space<vmem>>, vector<1x8x128xf32>,
    } else {
    }
    %c1_i32 = arith.constant 1 : i32
    %3 = arith.muli %arg0, %c1_i32 : i32
    %4 = arith.addi %3, %arg1 : i32
    %5 = tpu.iota {dimensions = array<i32: 0>} : vector<64x128xi32>
    %6 = tpu.iota {dimensions = array<i32: 1>} : vector<64x128xi32>
    %c64_i32 = arith.constant 64 : i32
    %7 = arith.muli %4, %c64_i32 : i32
    %8 = vector.broadcast %7 : i32 to vector<64x128xi32>
    %9 = arith.addi %8, %5 : vector<64x128xi32>
    %c128_i32 = arith.constant 128 : i32
    %10 = vector.broadcast %c128_i32 : i32 to vector<64x128xi32>
    %11 = arith.muli %9, %10 : vector<64x128xi32>
    %12 = arith.addi %11, %6 : vector<64x128xi32>
    %c8192_i32 = arith.constant 8192 : i32
    %13 = vector.broadcast %c8192_i32 : i32 to vector<64x128xi32>
    %14 = arith.cmpi slt, %12, %13 : vector<64x128xi32>
    %c0 = arith.constant 0 : index
    %c0_1 = arith.constant 0 : index
    %15 = vector.load %arg2[%c0, %c0_1] : memref<64x128xf32, #tpu.memory_space<vmem>>, vector<64x128xf32>
    %16 = arith.negf %15 : vector<64x128xf32>
    %17 = math.exp %16 : vector<64x128xf32>
    %cst = arith.constant 1.000000e+00 : f32
    %18 = vector.broadcast %cst : f32 to vector<64x128xf32>
    %19 = arith.addf %18, %17 : vector<64x128xf32>
    %20 = arith.divf %18, %19 : vector<64x128xf32>
    %c0_2 = arith.constant 0 : index
    %c0_3 = arith.constant 0 : index
    %21 = vector.load %arg3[%c0_2, %c0_3] : memref<64x128xi8, #tpu.memory_space<vmem>>, vector<64x128xi8>
    %22 = arith.uitofp %21 : vector<64x128xi8> to vector<64x128xf32>
    %cst_4 = arith.constant 2.550000e+02 : f32
    %23 = vector.broadcast %cst_4 : f32 to vector<64x128xf32>
    %24 = arith.cmpf one, %22, %23 : vector<64x128xf32>
    %25 = arith.andi %14, %24 : vector<64x128xi1>
    %cst_5 = arith.constant 9.99999997E-7 : f32
    %cst_6 = arith.constant 0.999998986 : f32
    %26 = vector.broadcast %cst_5 : f32 to vector<64x128xf32>
    %27 = arith.maximumf %26, %20 : vector<64x128xf32>
    %28 = vector.broadcast %cst_6 : f32 to vector<64x128xf32>
    %29 = arith.minimumf %28, %27 : vector<64x128xf32>
    %cst_7 = arith.constant 9.99999997E-7 : f32
    %cst_8 = arith.constant 0.999998986 : f32
    %30 = vector.broadcast %cst_7 : f32 to vector<64x128xf32>
    %31 = arith.maximumf %30, %22 : vector<64x128xf32>
    %32 = vector.broadcast %cst_8 : f32 to vector<64x128xf32>
    %33 = arith.minimumf %32, %31 : vector<64x128xf32>
    %cst_9 = arith.constant 1.000000e+00 : f32
    %34 = vector.broadcast %cst_9 : f32 to vector<64x128xf32>
    %35 = arith.subf %34, %33 : vector<64x128xf32>
    %cst_10 = arith.constant 1.000000e+00 : f32
    %36 = vector.broadcast %cst_10 : f32 to vector<64x128xf32>
    %37 = arith.subf %36, %29 : vector<64x128xf32>
    %38 = arith.mulf %35, %37 : vector<64x128xf32>
    %39 = arith.mulf %33, %29 : vector<64x128xf32>
    %40 = arith.addf %38, %39 : vector<64x128xf32>
    %cst_11 = arith.constant 1.000000e+00 : f32
    %41 = vector.broadcast %cst_11 : f32 to vector<64x128xf32>
    %42 = arith.subf %41, %40 : vector<64x128xf32>
    %43 = arith.mulf %42, %42 : vector<64x128xf32>
    %44 = arith.mulf %43, %42 : vector<64x128xf32>
    %cst_12 = arith.constant 0.000000e+00 : f32
    %45 = vector.broadcast %cst_12 : f32 to vector<64x128xf32>
    %46 = arith.subf %45, %44 : vector<64x128xf32>
    %47 = math.log %40 : vector<64x128xf32>
    %48 = arith.mulf %46, %47 : vector<64x128xf32>
    %cst_13 = arith.constant 0.000000e+00 : f32
    %49 = vector.broadcast %cst_13 : f32 to vector<64x128xf32>
    %50 = arith.select %25, %48, %49 : vector<64x128xi1>, vector<64x128xf32>
    %51 = arith.extui %25 : vector<64x128xi1> to vector<64x128xi32>
    %52 = arith.sitofp %51 : vector<64x128xi32> to vector<64x128xf32>
    %53 = vector.shape_cast %50 : vector<64x128xf32> to vector<8x8x128xf32>
    %cst_14 = arith.constant dense<0.000000e+00> : vector<8x128xf32>
    %54 = vector.multi_reduction <add>, %53, %cst_14 [0] : vector<8x8x128xf32> to vector<8x128xf32>
    %55 = vector.shape_cast %52 : vector<64x128xf32> to vector<8x8x128xf32>
    %cst_15 = arith.constant dense<0.000000e+00> : vector<8x128xf32>
    %56 = vector.multi_reduction <add>, %55, %cst_15 [0] : vector<8x8x128xf32> to vector<8x128xf32>
    %c0_16 = arith.constant 0 : index
    %c0_17 = arith.constant 0 : index
    %c0_18 = arith.constant 0 : index
    %57 = vector.load %arg4[%c0_16, %c0_17, %c0_18] : memref<1x8x128xf32, #tpu.memory_space<vmem>>, vector<1x8x128xf32>
    %58 = vector.shape_cast %54 : vector<8x128xf32> to vector<1x8x128xf32>
    %59 = arith.addf %57, %58 : vector<1x8x128xf32>
    %c0_19 = arith.constant 0 : index
    %c0_20 = arith.constant 0 : index
    %c0_21 = arith.constant 0 : index
    %60 = vector.load %arg4[%c0_19, %c0_20, %c0_21] : memref<1x8x128xf32, #tpu.memory_space<vmem>>, vector<1x8x128xf32>
    tpu.vector_store %arg4[%c0_19, %c0_20, %c0_21], %59 {strides = array<i32>} : memref<1x8x128xf32, #tpu.memory_space<vmem>>, vector<1x8x128xf32>,
    %c0_22 = arith.constant 0 : index
    %c0_23 = arith.constant 0 : index
    %c0_24 = arith.constant 0 : index
    %61 = vector.load %arg5[%c0_22, %c0_23, %c0_24] : memref<1x8x128xf32, #tpu.memory_space<vmem>>, vector<1x8x128xf32>
    %62 = vector.shape_cast %56 : vector<8x128xf32> to vector<1x8x128xf32>
    %63 = arith.addf %61, %62 : vector<1x8x128xf32>
    %c0_25 = arith.constant 0 : index
    %c0_26 = arith.constant 0 : index
    %c0_27 = arith.constant 0 : index
    %64 = vector.load %arg5[%c0_25, %c0_26, %c0_27] : memref<1x8x128xf32, #tpu.memory_space<vmem>>, vector<1x8x128xf32>
    tpu.vector_store %arg5[%c0_25, %c0_26, %c0_27], %63 {strides = array<i32>} : memref<1x8x128xf32, #tpu.memory_space<vmem>>, vector<1x8x128xf32>,
    return
  }
  func.func @transform_0(%arg0: i32, %arg1: i32) -> (i32, i32) {
    %c1_i32 = arith.constant 1 : i32
    %0 = arith.muli %arg0, %c1_i32 : i32
    %1 = arith.addi %0, %arg1 : i32
    %c0_i32 = arith.constant 0 : i32
    %2 = arith.minsi %1, %c0_i32 : i32
    %c0_i32_0 = arith.constant 0 : i32
    %c0_i32_1 = arith.constant 0 : i32
    return %2, %c0_i32_0 : i32, i32
  }
  func.func @transform_1(%arg0: i32, %arg1: i32) -> (i32, i32) {
    %c1_i32 = arith.constant 1 : i32
    %0 = arith.muli %arg0, %c1_i32 : i32
    %1 = arith.addi %0, %arg1 : i32
    %c0_i32 = arith.constant 0 : i32
    %2 = arith.minsi %1, %c0_i32 : i32
    %c0_i32_0 = arith.constant 0 : i32
    %c0_i32_1 = arith.constant 0 : i32
    return %2, %c0_i32_0 : i32, i32
  }
  func.func @transform_2(%arg0: i32, %arg1: i32) -> (i32, i32, i32) {
    %c0_i32 = arith.constant 0 : i32
    %c0_i32_0 = arith.constant 0 : i32
    %c0_i32_1 = arith.constant 0 : i32
    return %arg0, %c0_i32, %c0_i32_0 : i32, i32, i32
  }
  func.func @transform_3(%arg0: i32, %arg1: i32) -> (i32, i32, i32) {
    %c0_i32 = arith.constant 0 : i32
    %c0_i32_0 = arith.constant 0 : i32
    %c0_i32_1 = arith.constant 0 : i32
    return %arg0, %c0_i32, %c0_i32_0 : i32, i32, i32
  }
}

</mosaic_0001>

<llo_original>
// kernel: tpu_custom_call.1
$region0: #{tpu_custom_call.1}
  #allocation0 [shape = 'u32[]', space=smem, size = 0x4, offset = 0x4, fixed_abs, tag = 'smem constant byte address 0x4 - core index']
  #allocation1 [shape = 'u32[144,128]{1,0:T(1,128)}', space=vmem, size = 0x12000, scoped, tag = 'internal scratch']
  %s0 = inlined_call_operand.hbm [shape: f32[64,128], index: 0, kind: input, shape index: {}]
  %s1 = inlined_call_operand.hbm [shape: u8[64,128], index: 1, kind: input, shape index: {}]
  %s2 = inlined_call_operand.hbm [shape: f32[1,8,128], index: 2, kind: output, shape index: {0}]
  %s3 = inlined_call_operand.hbm [shape: f32[1,8,128], index: 3, kind: output, shape index: {1}]
  %4 = xla_tuple %s2, %s3
  %s5 = sld [smem:[#allocation0]]
  $region38: #{tpu_custom_call.1} parent=0
    _
  %s7 = ssub.s32 1, %s5
  %s8 = scalar_select 0, %s7, %s5
  $region1: #{tpu_custom_call.1} parent=0
    #allocation2 [shape = 'u8[32768]{0}', space=vmem, size = 0x8000, scoped, tag = 'input window, operand 0, single buffered']
    #allocation3 [shape = 's32[1]{0}', space=sflag, size = 0x4, scoped, tag = 'scoped memory for tpu_custom_call.1']
    #allocation4 [shape = 's32[1]{0}', space=sflag, size = 0x4, scoped, tag = 'scoped memory for tpu_custom_call.1']
    #allocation5 [shape = 'u8[8192]{0}', space=vmem, size = 0x2000, scoped, tag = 'input window, operand 1, single buffered']
    #allocation6 [shape = 's32[1]{0}', space=sflag, size = 0x4, scoped, tag = 'scoped memory for tpu_custom_call.1']
    #allocation7 [shape = 'u8[4096]{0}', space=vmem, size = 0x1000, scoped, tag = 'output window, operand 0, single buffered']
    #allocation8 [shape = 'u8[4096]{0}', space=vmem, size = 0x1000, scoped, tag = 'output window, operand 1, single buffered']
    #allocation9 [shape = 's32[1]{0}', space=sflag, size = 0x4, scoped, tag = 'scoped memory for tpu_custom_call.1']
    %9 = vsyncpa [#allocation3], 0
    %10 = vsyncpa [#allocation6], 0
    %11 = vsyncpa [#allocation4], 0
    %12 = vsyncpa [#allocation9], 0
    // Predicated region
    $region2: #{tpu_custom_call.1} parent=1 // pred_check
      _
    $region3: #{tpu_custom_call.1} parent=1 // pred_check_branch
      %14 = sbr.rel (0) target = $region5
    $region4: #{tpu_custom_call.1} parent=1 // pred_region
      %s15 = sadd.s32 0, 0
      %p16 = scmp.lt.s32.totalorder %s15, 0
      %s17 = scalar_select %p16, %s15, 0
      %s18 = smul.u32 8, %s17
      %s20 = ssub.s32 1024, 1024
      %21 = vsyncadd [#allocation3], %s20
      %s22 = smul.addr %s18, 128
      %s23 = scalar_lea.hbm %s0, %s22
      %s24 = sshll.u32 [#allocation2], 4
      %s25 = int_to_ptr.vmem [resolvable:$true] %s24
      %30 = dma.hbm_to_vmem [thread:$0]  %s23, 1024, %s25, [#allocation3], 128, 128, 8
    $region5: #{tpu_custom_call.1} parent=1 // pred_fallthru
      _
    // Predicated region
    $region6: #{tpu_custom_call.1} parent=1 // pred_check
      _
    $region7: #{tpu_custom_call.1} parent=1 // pred_check_branch
      %32 = sbr.rel (0) target = $region9
    $region8: #{tpu_custom_call.1} parent=1 // pred_region
      %s33 = sadd.s32 0, 0
      %p34 = scmp.lt.s32.totalorder %s33, 0
      %s35 = scalar_select %p34, %s33, 0
      %s36 = smul.u32 2, %s35
      %s38 = ssub.s32 256, 256
      %39 = vsyncadd [#allocation6], %s38
      %s40 = smul.addr %s36, 128
      %s41 = scalar_lea.hbm %s1, %s40
      %s42 = sshll.u32 [#allocation5], 4
      %s43 = int_to_ptr.vmem [resolvable:$true] %s42
      %48 = dma.hbm_to_vmem [thread:$0]  %s41, 256, %s43, [#allocation6], 128, 128, 8
    $region9: #{tpu_custom_call.1} parent=1 // pred_fallthru
      _
    // Predicated region
    $region10: #{tpu_custom_call.1} parent=1 // pred_check
      _
    $region11: #{tpu_custom_call.1} parent=1 // pred_check_branch
      %50 = sbr.rel (0) target = $region13
    $region12: #{tpu_custom_call.1} parent=1 // pred_region
      %51 = dma.done [#allocation3], 1024
    $region13: #{tpu_custom_call.1} parent=1 // pred_fallthru
      _
    // Predicated region
    $region14: #{tpu_custom_call.1} parent=1 // pred_check
      _
    $region15: #{tpu_custom_call.1} parent=1 // pred_check_branch
      %53 = sbr.rel (0) target = $region17
    $region16: #{tpu_custom_call.1} parent=1 // pred_region
      %54 = dma.done [#allocation6], 256
    $region17: #{tpu_custom_call.1} parent=1 // pred_fallthru
      _
    %s55 = sadd.s32 0, 0
    %p56 = scmp.lt.s32.totalorder %s55, 0
    %s57 = scalar_select %p56, %s55, 0
    %s58 = smul.u32 8, %s57
    %s59 = sadd.s32 0, 0
    %p60 = scmp.lt.s32.totalorder %s59, 0
    %s61 = scalar_select %p60, %s59, 0
    %s62 = smul.u32 2, %s61
    %p63 = scmp.eq.s32.totalorder 0, 0
    // Predicated region
    $region18: #{tpu_custom_call.1} parent=1 // pred_check
      %p64 = pneg %p63
    $region19: #{tpu_custom_call.1} parent=1 // pred_check_branch
      %66 = sbr.rel (%p64) target = $region21
    $region20: #{tpu_custom_call.1} parent=1 // pred_region
      %67 = vst [vmem:[#allocation7] sm:$0xff] 0.0
      %68 = vst [vmem:[#allocation8] sm:$0xff] 0.0
    $region21: #{tpu_custom_call.1} parent=1 // pred_fallthru
      _
    %s69 = sadd.s32 0, 0
    %v70 = vlaneseq
    %v71 = vshrl.u32 %v70, 7
    %v72 = vadd.s32 %v71, 8
    %v73 = vadd.s32 %v71, 16
    %v74 = vadd.s32 %v71, 24
    %v75 = vadd.s32 %v71, 32
    %v76 = vadd.s32 %v71, 40
    %v77 = vadd.s32 %v71, 48
    %v78 = vadd.s32 %v71, 56
    %v79 = vlaneseq
    %v80 = vand.u32 %v79, 127
    %s81 = smul.u32 %s69, 64
    %v82 = vstv %s81
    %v83 = vadd.s32 %v82, %v71
    %v84 = vadd.s32 %v82, %v72
    %v85 = vadd.s32 %v82, %v73
    %v86 = vadd.s32 %v82, %v74
    %v87 = vadd.s32 %v82, %v75
    %v88 = vadd.s32 %v82, %v76
    %v89 = vadd.s32 %v82, %v77
    %v90 = vadd.s32 %v82, %v78
    %v91 = vmul.u32 %v83, 128
    %v92 = vmul.u32 %v84, 128
    %v93 = vmul.u32 %v85, 128
    %v94 = vmul.u32 %v86, 128
    %v95 = vmul.u32 %v87, 128
    %v96 = vmul.u32 %v88, 128
    %v97 = vmul.u32 %v89, 128
    %v98 = vmul.u32 %v90, 128
    %v99 = vadd.s32 %v91, %v80
    %v100 = vadd.s32 %v92, %v80
    %v101 = vadd.s32 %v93, %v80
    %v102 = vadd.s32 %v94, %v80
    %v103 = vadd.s32 %v95, %v80
    %v104 = vadd.s32 %v96, %v80
    %v105 = vadd.s32 %v97, %v80
    %v106 = vadd.s32 %v98, %v80
    %vm107 = vcmp.lt.s32.totalorder %v99, 8192
    %vm108 = vcmp.lt.s32.totalorder %v100, 8192
    %vm109 = vcmp.lt.s32.totalorder %v101, 8192
    %vm110 = vcmp.lt.s32.totalorder %v102, 8192
    %vm111 = vcmp.lt.s32.totalorder %v103, 8192
    %vm112 = vcmp.lt.s32.totalorder %v104, 8192
    %vm113 = vcmp.lt.s32.totalorder %v105, 8192
    %vm114 = vcmp.lt.s32.totalorder %v106, 8192
    %v115 = vld [vmem:[#allocation2] sm:$0xff]
    %v116 = vld [vmem:[#allocation2 + $0x8] sm:$0xff]
    %v117 = vld [vmem:[#allocation2 + $0x10] sm:$0xff]
    %v118 = vld [vmem:[#allocation2 + $0x18] sm:$0xff]
    %v119 = vld [vmem:[#allocation2 + $0x20] sm:$0xff]
    %v120 = vld [vmem:[#allocation2 + $0x28] sm:$0xff]
    %v121 = vld [vmem:[#allocation2 + $0x30] sm:$0xff]
    %v122 = vld [vmem:[#allocation2 + $0x38] sm:$0xff]
    %v123 = vxor.u32 %v115, 2147483648
    %v124 = vxor.u32 %v116, 2147483648
    %v125 = vxor.u32 %v117, 2147483648
    %v126 = vxor.u32 %v118, 2147483648
    %v127 = vxor.u32 %v119, 2147483648
    %v128 = vxor.u32 %v120, 2147483648
    %v129 = vxor.u32 %v121, 2147483648
    %v130 = vxor.u32 %v122, 2147483648
    %v131 = vmul.f32 %v123, 1.442695
    %v132 = vpow.pop %v131
    %v133 = vmul.f32 %v124, 1.442695
    %v134 = vpow.pop %v133
    %v135 = vmul.f32 %v125, 1.442695
    %v136 = vpow.pop %v135
    %v137 = vmul.f32 %v126, 1.442695
    %v138 = vpow.pop %v137
    %v139 = vmul.f32 %v127, 1.442695
    %v140 = vpow.pop %v139
    %v141 = vmul.f32 %v128, 1.442695
    %v142 = vpow.pop %v141
    %v143 = vmul.f32 %v129, 1.442695
    %v144 = vpow.pop %v143
    %v145 = vmul.f32 %v130, 1.442695
    %v146 = vpow.pop %v145
    %v147 = vadd.f32 %v132, 1.0
    %v148 = vadd.f32 %v134, 1.0
    %v149 = vadd.f32 %v136, 1.0
    %v150 = vadd.f32 %v138, 1.0
    %v151 = vadd.f32 %v140, 1.0
    %v152 = vadd.f32 %v142, 1.0
    %v153 = vadd.f32 %v144, 1.0
    %v154 = vadd.f32 %v146, 1.0
    %v155 = vrcp.pop %v147
    %v156 = vmul.f32 1.0, %v155
    %v157 = vrcp.pop %v148
    %v158 = vmul.f32 1.0, %v157
    %v159 = vrcp.pop %v149
    %v160 = vmul.f32 1.0, %v159
    %v161 = vrcp.pop %v150
    %v162 = vmul.f32 1.0, %v161
    %v163 = vrcp.pop %v151
    %v164 = vmul.f32 1.0, %v163
    %v165 = vrcp.pop %v152
    %v166 = vmul.f32 1.0, %v165
    %v167 = vrcp.pop %v153
    %v168 = vmul.f32 1.0, %v167
    %v169 = vrcp.pop %v154
    %v170 = vmul.f32 1.0, %v169
    %v171 = vld [vmem:[#allocation5] sm:$0xff]
    %v172 = vld [vmem:[#allocation5 + $0x8] sm:$0xff]
    %v173 = vunpack.c.0.s8 %v171
    %v174 = vunpack.c.1.s8 %v171
    %v175 = vunpack.c.2.s8 %v171
    %v176 = vunpack.c.3.s8 %v171
    %v177 = vunpack.c.0.s8 %v172
    %v178 = vunpack.c.1.s8 %v172
    %v179 = vunpack.c.2.s8 %v172
    %v180 = vunpack.c.3.s8 %v172
    %v181 = vand.u32 %v173, 255
    %v182 = vand.u32 %v174, 255
    %v183 = vand.u32 %v175, 255
    %v184 = vand.u32 %v176, 255
    %v185 = vand.u32 %v177, 255
    %v186 = vand.u32 %v178, 255
    %v187 = vand.u32 %v179, 255
    %v188 = vand.u32 %v180, 255
    %v189 = vcvt.s32.f32 %v181
    %v190 = vcvt.s32.f32 %v182
    %v191 = vcvt.s32.f32 %v183
    %v192 = vcvt.s32.f32 %v184
    %v193 = vcvt.s32.f32 %v185
    %v194 = vcvt.s32.f32 %v186
    %v195 = vcvt.s32.f32 %v187
    %v196 = vcvt.s32.f32 %v188
    %vm197 = vcmp.ne.f32.partialorder %v189, 255.0
    %vm198 = vcmp.ne.f32.partialorder %v190, 255.0
    %vm199 = vcmp.ne.f32.partialorder %v191, 255.0
    %vm200 = vcmp.ne.f32.partialorder %v192, 255.0
    %vm201 = vcmp.ne.f32.partialorder %v193, 255.0
    %vm202 = vcmp.ne.f32.partialorder %v194, 255.0
    %vm203 = vcmp.ne.f32.partialorder %v195, 255.0
    %vm204 = vcmp.ne.f32.partialorder %v196, 255.0
    %vm205 = vmand %vm107, %vm197
    %vm206 = vmand %vm108, %vm198
    %vm207 = vmand %vm109, %vm199
    %vm208 = vmand %vm110, %vm200
    %vm209 = vmand %vm111, %vm201
    %vm210 = vmand %vm112, %vm202
    %vm211 = vmand %vm113, %vm203
    %vm212 = vmand %vm114, %vm204
    %v213 = vmax.f32 %v156, 1e-06
    %v214 = vmax.f32 %v158, 1e-06
    %v215 = vmax.f32 %v160, 1e-06
    %v216 = vmax.f32 %v162, 1e-06
    %v217 = vmax.f32 %v164, 1e-06
    %v218 = vmax.f32 %v166, 1e-06
    %v219 = vmax.f32 %v168, 1e-06
    %v220 = vmax.f32 %v170, 1e-06
    %v221 = vmin.f32 %v213, 0.999999
    %v222 = vmin.f32 %v214, 0.999999
    %v223 = vmin.f32 %v215, 0.999999
    %v224 = vmin.f32 %v216, 0.999999
    %v225 = vmin.f32 %v217, 0.999999
    %v226 = vmin.f32 %v218, 0.999999
    %v227 = vmin.f32 %v219, 0.999999
    %v228 = vmin.f32 %v220, 0.999999
    %v229 = vmax.f32 %v189, 1e-06
    %v230 = vmax.f32 %v190, 1e-06
    %v231 = vmax.f32 %v191, 1e-06
    %v232 = vmax.f32 %v192, 1e-06
    %v233 = vmax.f32 %v193, 1e-06
    %v234 = vmax.f32 %v194, 1e-06
    %v235 = vmax.f32 %v195, 1e-06
    %v236 = vmax.f32 %v196, 1e-06
    %v237 = vmin.f32 %v229, 0.999999
    %v238 = vmin.f32 %v230, 0.999999
    %v239 = vmin.f32 %v231, 0.999999
    %v240 = vmin.f32 %v232, 0.999999
    %v241 = vmin.f32 %v233, 0.999999
    %v242 = vmin.f32 %v234, 0.999999
    %v243 = vmin.f32 %v235, 0.999999
    %v244 = vmin.f32 %v236, 0.999999
    %v245 = vsub.f32 1.0, %v237
    %v246 = vsub.f32 1.0, %v238
    %v247 = vsub.f32 1.0, %v239
    %v248 = vsub.f32 1.0, %v240
    %v249 = vsub.f32 1.0, %v241
    %v250 = vsub.f32 1.0, %v242
    %v251 = vsub.f32 1.0, %v243
    %v252 = vsub.f32 1.0, %v244
    %v253 = vsub.f32 1.0, %v221
    %v254 = vsub.f32 1.0, %v222
    %v255 = vsub.f32 1.0, %v223
    %v256 = vsub.f32 1.0, %v224
    %v257 = vsub.f32 1.0, %v225
    %v258 = vsub.f32 1.0, %v226
    %v259 = vsub.f32 1.0, %v227
    %v260 = vsub.f32 1.0, %v228
    %v261 = vmul.f32 %v245, %v253
    %v262 = vmul.f32 %v246, %v254
    %v263 = vmul.f32 %v247, %v255
    %v264 = vmul.f32 %v248, %v256
    %v265 = vmul.f32 %v249, %v257
    %v266 = vmul.f32 %v250, %v258
    %v267 = vmul.f32 %v251, %v259
    %v268 = vmul.f32 %v252, %v260
    %v269 = vmul.f32 %v237, %v221
    %v270 = vmul.f32 %v238, %v222
    %v271 = vmul.f32 %v239, %v223
    %v272 = vmul.f32 %v240, %v224
    %v273 = vmul.f32 %v241, %v225
    %v274 = vmul.f32 %v242, %v226
    %v275 = vmul.f32 %v243, %v227
    %v276 = vmul.f32 %v244, %v228
    %v277 = vadd.f32 %v261, %v269
    %v278 = vadd.f32 %v262, %v270
    %v279 = vadd.f32 %v263, %v271
    %v280 = vadd.f32 %v264, %v272
    %v281 = vadd.f32 %v265, %v273
    %v282 = vadd.f32 %v266, %v274
    %v283 = vadd.f32 %v267, %v275
    %v284 = vadd.f32 %v268, %v276
    %v285 = vsub.f32 1.0, %v277
    %v286 = vsub.f32 1.0, %v278
    %v287 = vsub.f32 1.0, %v279
    %v288 = vsub.f32 1.0, %v280
    %v289 = vsub.f32 1.0, %v281
    %v290 = vsub.f32 1.0, %v282
    %v291 = vsub.f32 1.0, %v283
    %v292 = vsub.f32 1.0, %v284
    %v293 = vmul.f32 %v285, %v285
    %v294 = vmul.f32 %v286, %v286
    %v295 = vmul.f32 %v287, %v287
    %v296 = vmul.f32 %v288, %v288
    %v297 = vmul.f32 %v289, %v289
    %v298 = vmul.f32 %v290, %v290
    %v299 = vmul.f32 %v291, %v291
    %v300 = vmul.f32 %v292, %v292
    %v301 = vmul.f32 %v293, %v285
    %v302 = vmul.f32 %v294, %v286
    %v303 = vmul.f32 %v295, %v287
    %v304 = vmul.f32 %v296, %v288
    %v305 = vmul.f32 %v297, %v289
    %v306 = vmul.f32 %v298, %v290
    %v307 = vmul.f32 %v299, %v291
    %v308 = vmul.f32 %v300, %v292
    %v309 = vsub.f32 0.0, %v301
    %v310 = vsub.f32 0.0, %v302
    %v311 = vsub.f32 0.0, %v303
    %v312 = vsub.f32 0.0, %v304
    %v313 = vsub.f32 0.0, %v305
    %v314 = vsub.f32 0.0, %v306
    %v315 = vsub.f32 0.0, %v307
    %v316 = vsub.f32 0.0, %v308
    %v317 = vlog2.pop %v277
    %v318 = vmul.f32 %v317, 0.6931472
    %v319 = vlog2.pop %v278
    %v320 = vmul.f32 %v319, 0.6931472
    %v321 = vlog2.pop %v279
    %v322 = vmul.f32 %v321, 0.6931472
    %v323 = vlog2.pop %v280
    %v324 = vmul.f32 %v323, 0.6931472
    %v325 = vlog2.pop %v281
    %v326 = vmul.f32 %v325, 0.6931472
    %v327 = vlog2.pop %v282
    %v328 = vmul.f32 %v327, 0.6931472
    %v329 = vlog2.pop %v283
    %v330 = vmul.f32 %v329, 0.6931472
    %v331 = vlog2.pop %v284
    %v332 = vmul.f32 %v331, 0.6931472
    %v333 = vmul.f32 %v309, %v318
    %v334 = vmul.f32 %v310, %v320
    %v335 = vmul.f32 %v311, %v322
    %v336 = vmul.f32 %v312, %v324
    %v337 = vmul.f32 %v313, %v326
    %v338 = vmul.f32 %v314, %v328
    %v339 = vmul.f32 %v315, %v330
    %v340 = vmul.f32 %v316, %v332
    %v341 = vsel %vm205, %v333, 0.0
    %v342 = vsel %vm206, %v334, 0.0
    %v343 = vsel %vm207, %v335, 0.0
    %v344 = vsel %vm208, %v336, 0.0
    %v345 = vsel %vm209, %v337, 0.0
    %v346 = vsel %vm210, %v338, 0.0
    %v347 = vsel %vm211, %v339, 0.0
    %v348 = vsel %vm212, %v340, 0.0
    %v349 = vsel %vm205, 1, 0
    %v350 = vsel %vm206, 1, 0
    %v351 = vsel %vm207, 1, 0
    %v352 = vsel %vm208, 1, 0
    %v353 = vsel %vm209, 1, 0
    %v354 = vsel %vm210, 1, 0
    %v355 = vsel %vm211, 1, 0
    %v356 = vsel %vm212, 1, 0
    %v357 = vcvt.s32.f32 %v349
    %v358 = vcvt.s32.f32 %v350
    %v359 = vcvt.s32.f32 %v351
    %v360 = vcvt.s32.f32 %v352
    %v361 = vcvt.s32.f32 %v353
    %v362 = vcvt.s32.f32 %v354
    %v363 = vcvt.s32.f32 %v355
    %v364 = vcvt.s32.f32 %v356
    %v365 = vadd.f32 %v341, %v342
    %v366 = vadd.f32 %v365, %v343
    %v367 = vadd.f32 %v366, %v344
    %v368 = vadd.f32 %v367, %v345
    %v369 = vadd.f32 %v368, %v346
    %v370 = vadd.f32 %v369, %v347
    %v371 = vadd.f32 %v370, %v348
    %v372 = vadd.f32 %v357, %v358
    %v373 = vadd.f32 %v372, %v359
    %v374 = vadd.f32 %v373, %v360
    %v375 = vadd.f32 %v374, %v361
    %v376 = vadd.f32 %v375, %v362
    %v377 = vadd.f32 %v376, %v363
    %v378 = vadd.f32 %v377, %v364
    %v379 = vld [vmem:[#allocation7] sm:$0xff]
    %v380 = vadd.f32 %v379, %v371
    %381 = vst [vmem:[#allocation7] sm:$0xff] %v380
    %v382 = vld [vmem:[#allocation8] sm:$0xff]
    %v383 = vadd.f32 %v382, %v378
    %384 = vst [vmem:[#allocation8] sm:$0xff] %v383
    // Predicated region
    $region22: #{tpu_custom_call.1} parent=1 // pred_check
      _
    $region23: #{tpu_custom_call.1} parent=1 // pred_check_branch
      %386 = sbr.rel (0) target = $region25
    $region24: #{tpu_custom_call.1} parent=1 // pred_region
      %s388 = ssub.s32 128, 128
      %389 = vsyncadd [#allocation4], %s388
      %s391 = sshll.u32 [#allocation7], 4
      %s392 = int_to_ptr.vmem [resolvable:$true] %s391
      %394 = dma.vmem_to_hbm [thread:$0]  %s392, 128, %s2, [#allocation4]
    $region25: #{tpu_custom_call.1} parent=1 // pred_fallthru
      _
    // Predicated region
    $region26: #{tpu_custom_call.1} parent=1 // pred_check
      _
    $region27: #{tpu_custom_call.1} parent=1 // pred_check_branch
      %396 = sbr.rel (0) target = $region29
    $region28: #{tpu_custom_call.1} parent=1 // pred_region
      %s398 = ssub.s32 128, 128
      %399 = vsyncadd [#allocation9], %s398
      %s401 = sshll.u32 [#allocation8], 4
      %s402 = int_to_ptr.vmem [resolvable:$true] %s401
      %404 = dma.vmem_to_hbm [thread:$0]  %s402, 128, %s3, [#allocation9]
    $region29: #{tpu_custom_call.1} parent=1 // pred_fallthru
      _
    // Predicated region
    $region30: #{tpu_custom_call.1} parent=1 // pred_check
      _
    $region31: #{tpu_custom_call.1} parent=1 // pred_check_branch
      %406 = sbr.rel (0) target = $region33
    $region32: #{tpu_custom_call.1} parent=1 // pred_region
      %407 = dma.done [#allocation4], 128
    $region33: #{tpu_custom_call.1} parent=1 // pred_fallthru
      _
    // Predicated region
    $region34: #{tpu_custom_call.1} parent=1 // pred_check
      _
    $region35: #{tpu_custom_call.1} parent=1 // pred_check_branch
      %409 = sbr.rel (0) target = $region37
    $region36: #{tpu_custom_call.1} parent=1 // pred_region
      %410 = dma.done [#allocation9], 128
    $region37: #{tpu_custom_call.1} parent=1 // pred_fallthru
      _
    %411 = vsyncpa [#allocation3], 1
    %412 = vsyncpa [#allocation6], 1
    %413 = vsyncpa [#allocation4], 1
    %414 = vsyncpa [#allocation9], 1

</llo_original>
